<compile_context>
chip_gen: v7x
topology: tpu7x:2x2x1
jax: 0.10.0
libtpu: 0.0.40
codegen_flags: <defaults>
</compile_context>

<pallas_src>
import jax
import jax.numpy as jnp
from jax.experimental import pallas as pl
from jax.experimental.pallas import tpu as pltpu


def _round_up(v, m):
    return ((v + m - 1) // m) * m


def _vmem_cap_bytes():
    # Generation-aware budget: ~75% of physical VMEM (v5e/v6e 128 MiB -> 96,
    # v7x 64 MiB -> 48).  Conservative fallback if the query is unavailable.
    try:
        info = pltpu.get_tpu_info()
        cap = int(getattr(info, "vmem_capacity_bytes", 0))
        if cap > 0:
            return (cap * 3) // 4
    except Exception:
        pass
    return 48 << 20


def _biaffine_kernel(x_ref, w_ref, yt_ref, o_ref, xw_ref):
    # x_ref : (TSX, Dx)       bf16   row tile of x (bias folded in)
    # w_ref : (GO, Dx, Dy)    bf16   group of GO output-channel weights
    # yt_ref: (Dy, TSY)       bf16   pre-transposed column tile of y
    # o_ref : (GO, TSX, TSY)  out    score tile per channel in the group
    # xw_ref: (GO, TSX, Dy)   bf16   scratch: cached x @ W[o]
    go = w_ref.shape[0]

    # Recompute the xW cache only when entering a new (b, o-group, sx) slice;
    # sy is the innermost ("arbitrary") axis so sy == 0 is exactly that event.
    @pl.when(pl.program_id(3) == 0)
    def _():
        for o in range(go):  # go <= 4, fully unrolled at trace time
            xw = jnp.dot(x_ref[...], w_ref[o],
                         preferred_element_type=jnp.float32)
            xw_ref[o] = xw.astype(xw_ref.dtype)

    # Canonical (M,K)x(K,N) matmuls: y arrives pre-transposed, no XLU transpose.
    for o in range(go):
        s = jnp.dot(xw_ref[o], yt_ref[...],
                    preferred_element_type=jnp.float32)
        o_ref[o] = s.astype(o_ref.dtype)


def biaffine_pallas(x, y, weight, bias_x=True, bias_y=True, *,
                    compute_dtype=jnp.bfloat16, out_dtype=jnp.float32):
    """x, y: [B, S, n_in]; weight: [n_out, n_in+bias_x, n_in+bias_y].

    Returns [B, n_out, S, S] (squeezed to [B, S, S] when n_out == 1).
    """
    B, S, n_in = x.shape
    n_out, Dx, Dy = weight.shape
    assert Dx == n_in + int(bias_x) and Dy == n_in + int(bias_y), \
        "weight must be [n_out, n_in+bias_x, n_in+bias_y]"

    # Lane-aligned feature dims (zero padding is exact: padded x/y features AND
    # padded W rows/cols are zero).
    Dx_p = _round_up(Dx, 128)
    Dy_p = _round_up(Dy, 128)

    # Sequence tiles: large TSX cuts y-tile re-reads; TSY=256 keeps output
    # stores lane-dense.  For small S, clamp to the full dim (legal block shape,
    # zero masking); for large S, boundary tiles use masked stores against the
    # EXACT-shape output (no padded output / post-kernel slice).
    TSX = 512 if S >= 512 else S
    TSY = 256 if S >= 256 else (128 if S >= 128 else S)

    # Fold up to GO output channels into each grid step so x/y tiles are not
    # re-DMA'd n_out times; shrink GO if the W group would blow the VMEM budget.
    out_itemsize = jnp.dtype(out_dtype).itemsize
    cap = _vmem_cap_bytes()
    GO = max(1, min(n_out, 4))

    def _step_bytes(go):
        return (2 * TSX * Dx_p * 2            # x tile (bf16, double-buffered)
                + 2 * go * Dx_p * Dy_p * 2    # W group (bf16, double-buffered)
                + 2 * Dy_p * TSY * 2          # y^T tile (bf16, double-buffered)
                + 2 * go * TSX * TSY * out_itemsize  # out tile (double-buffered)
                + go * TSX * Dy_p * 2)        # xW scratch (single copy)

    while GO > 1 and _step_bytes(GO) + (4 << 20) > cap:
        GO -= 1
    n_out_p = _round_up(n_out, GO)
    OG = n_out_p // GO

    Sx_pad = _round_up(S, TSX)   # == S whenever S < 512
    Sy_pad = _round_up(S, TSY)   # == S whenever S < 128

    cdt = compute_dtype
    # Fused bias + zero-pad: x / y are materialized exactly once (no
    # concatenate-then-pad double pass).
    x_p = jnp.zeros((B, Sx_pad, Dx_p), cdt).at[:, :S, :n_in].set(x.astype(cdt))
    if bias_x:
        x_p = x_p.at[:, :S, n_in].set(1.0)
    # y is stored pre-transposed as (B, Dy_p, S_pad) so the inner matmul is a
    # canonical (M,K)x(K,N) contraction (no in-kernel transpose / XLU traffic).
    yt_p = jnp.zeros((B, Dy_p, Sy_pad), cdt).at[:, :n_in, :S].set(
        jnp.swapaxes(y, 1, 2).astype(cdt))
    if bias_y:
        yt_p = yt_p.at[:, n_in, :S].set(1.0)
    w_p = jnp.zeros((n_out_p, Dx_p, Dy_p), cdt).at[:n_out, :Dx, :Dy].set(
        weight.astype(cdt))

    grid = (B, OG, Sx_pad // TSX, Sy_pad // TSY)
    vmem_limit = int(min(cap, max(_step_bytes(GO) + (4 << 20), 16 << 20)))

    # NOTE: when OG == 1 the W block index never changes, so its double buffer
    # is pure VMEM waste; pipeline_mode=pl.Buffered(1) on the W spec would free
    # it (mostly relevant on v7x's 64 MiB VMEM).  Kept default for robustness.
    out = pl.pallas_call(
        _biaffine_kernel,
        out_shape=jax.ShapeDtypeStruct((B, n_out, S, S), out_dtype),
        grid_spec=pltpu.PrefetchScalarGridSpec(
            num_scalar_prefetch=0,
            grid=grid,
            in_specs=[
                # x tile: depends on (b, sx) only -> resident across og/sy.
                pl.BlockSpec((pl.Squeezed(), TSX, Dx_p),
                             lambda b, og, sx, sy: (b, sx, 0)),
                # W group: depends on og only -> fetched once per group.
                pl.BlockSpec((GO, Dx_p, Dy_p),
                             lambda b, og, sx, sy: (og, 0, 0)),
                # y^T tile: depends on (b, sy) -> streamed along the inner axis.
                pl.BlockSpec((pl.Squeezed(), Dy_p, TSY),
                             lambda b, og, sx, sy: (b, 0, sy)),
            ],
            out_specs=pl.BlockSpec((pl.Squeezed(), GO, TSX, TSY),
                                   lambda b, og, sx, sy: (b, og, sx, sy)),
            scratch_shapes=[pltpu.VMEM((GO, TSX, Dy_p), cdt)],
        ),
        compiler_params=pltpu.CompilerParams(
            # B * OG * Sx_tiles parallel axes keep both v7x TensorCores busy;
            # sy stays "arbitrary" because the xW cache is keyed off sy == 0.
            dimension_semantics=("parallel", "parallel", "parallel",
                                 "arbitrary"),
            vmem_limit_bytes=vmem_limit,
        ),
    )(x_p, w_p, yt_p)

    if n_out == 1:
        out = jnp.squeeze(out, axis=1)
    return out


if __name__ == "__main__":
    key = jax.random.PRNGKey(0)
    kx, ky, kw = jax.random.split(key, 3)

    # Small deterministic config matching the module's forward signature.
    B, S, n_in, n_out = 2, 8, 32, 2
    bias_x = bias_y = True
    x = jax.random.normal(kx, (B, S, n_in), dtype=jnp.float32)
    y = jax.random.normal(ky, (B, S, n_in), dtype=jnp.float32)
    # NOTE: the PyTorch module zero-inits the weight (output would be all
    # zeros); use a deterministic random init so the kernel path is exercised.
    weight = 0.1 * jax.random.normal(
        kw, (n_out, n_in + int(bias_x), n_in + int(bias_y)), dtype=jnp.float32)

    out = biaffine_pallas(x, y, weight, bias_x=bias_x, bias_y=bias_y)
    out = jax.block_until_ready(out)

    # Pure-JAX f32 reference (same semantics as the PyTorch forward).
    xb = jnp.concatenate([x, jnp.ones_like(x[..., :1])], axis=-1)
    yb = jnp.concatenate([y, jnp.ones_like(y[..., :1])], axis=-1)
    ref = jnp.einsum('bxi,oij,byj->boxy', xb, weight, yb)

    assert out.shape == ref.shape, (out.shape, ref.shape)
    # bf16 operands -> compare with a scale-relative tolerance.
    err = float(jnp.max(jnp.abs(out - ref)))
    scale = float(jnp.max(jnp.abs(ref))) + 1e-6
    assert err / scale < 5e-2, (err, scale)

    # n_out == 1 path (automatic squeeze), same as the module.
    w1 = 0.1 * jax.random.normal(kw, (1, n_in + 1, n_in + 1), dtype=jnp.float32)
    out1 = jax.block_until_ready(biaffine_pallas(x, y, w1))
    ref1 = jnp.einsum('bxi,ij,byj->bxy', xb, w1[0], yb)
    assert out1.shape == ref1.shape, (out1.shape, ref1.shape)
    err1 = float(jnp.max(jnp.abs(out1 - ref1)))
    scale1 = float(jnp.max(jnp.abs(ref1))) + 1e-6
    assert err1 / scale1 < 5e-2, (err1, scale1)

    print("KERNEL_OK")
</pallas_src>

<mosaic_0001>
module attributes {stable_mosaic.version = 11 : i64} {
  func.func @_biaffine_kernel(%arg0: i32, %arg1: i32, %arg2: i32, %arg3: i32, %arg4: memref<1x8x128xbf16, #tpu.memory_space<vmem>>, %arg5: memref<2x128x128xbf16, #tpu.memory_space<vmem>>, %arg6: memref<1x128x8xbf16, #tpu.memory_space<vmem>>, %arg7: memref<1x2x8x8xf32, #tpu.memory_space<vmem>>, %arg8: memref<2x8x128xbf16, #tpu.memory_space<vmem>>) attributes {dimension_semantics = [#tpu.dimension_semantics<parallel>, #tpu.dimension_semantics<parallel>, #tpu.dimension_semantics<parallel>, #tpu.dimension_semantics<arbitrary>], iteration_bounds = array<i64: 2, 1, 1, 1>, scalar_prefetch = 0 : i64, scratch_operands = 1 : i64, tpu.core_type = #tpu.core_type<tc>, window_params = [{transform_indices = @transform_0, window_bounds = array<i64: 1, 8, 128>}, {transform_indices = @transform_1, window_bounds = array<i64: 2, 128, 128>}, {transform_indices = @transform_2, window_bounds = array<i64: 1, 128, 8>}, {transform_indices = @transform_3, window_bounds = array<i64: 1, 2, 8, 8>}]} {
    %c0_i32 = arith.constant 0 : i32
    %0 = arith.cmpi eq, %arg3, %c0_i32 : i32
    %1 = arith.extui %0 : i1 to i32
    %c0_i32_0 = arith.constant 0 : i32
    %2 = arith.cmpi ne, %1, %c0_i32_0 : i32
    scf.if %2 {
      %c0_20 = arith.constant 0 : index
      %c0_21 = arith.constant 0 : index
      %c0_22 = arith.constant 0 : index
      %19 = vector.load %arg4[%c0_20, %c0_21, %c0_22] : memref<1x8x128xbf16, #tpu.memory_space<vmem>>, vector<1x8x128xbf16>
      %20 = vector.shape_cast %19 : vector<1x8x128xbf16> to vector<8x128xbf16>
      %c0_23 = arith.constant 0 : index
      %c0_24 = arith.constant 0 : index
      %c0_25 = arith.constant 0 : index
      %21 = vector.load %arg5[%c0_23, %c0_24, %c0_25] : memref<2x128x128xbf16, #tpu.memory_space<vmem>>, vector<1x128x128xbf16>
      %22 = vector.shape_cast %21 : vector<1x128x128xbf16> to vector<128x128xbf16>
      %cst_26 = arith.constant dense<0.000000e+00> : vector<8x128xf32>
      %23 = tpu.matmul %20, %22, %cst_26 {dimension_numbers = #tpu.dot_dimension_numbers<[1], [0], [0], [1], [0, 0, 1, 1], [], []>} : vector<8x128xbf16>, vector<128x128xbf16>, vector<8x128xf32> -> vector<8x128xf32>
      %24 = arith.truncf %23 : vector<8x128xf32> to vector<8x128xbf16>
      %c0_27 = arith.constant 0 : index
      %c0_28 = arith.constant 0 : index
      %c0_29 = arith.constant 0 : index
      %25 = vector.load %arg8[%c0_27, %c0_28, %c0_29] : memref<2x8x128xbf16, #tpu.memory_space<vmem>>, vector<1x8x128xbf16>
      %26 = vector.shape_cast %25 : vector<1x8x128xbf16> to vector<8x128xbf16>
      %27 = vector.shape_cast %24 : vector<8x128xbf16> to vector<1x8x128xbf16>
      tpu.vector_store %arg8[%c0_27, %c0_28, %c0_29], %27 {strides = array<i32>} : memref<2x8x128xbf16, #tpu.memory_space<vmem>>, vector<1x8x128xbf16>,
      %c0_30 = arith.constant 0 : index
      %c0_31 = arith.constant 0 : index
      %c0_32 = arith.constant 0 : index
      %28 = vector.load %arg4[%c0_30, %c0_31, %c0_32] : memref<1x8x128xbf16, #tpu.memory_space<vmem>>, vector<1x8x128xbf16>
      %29 = vector.shape_cast %28 : vector<1x8x128xbf16> to vector<8x128xbf16>
      %c1_33 = arith.constant 1 : index
      %c0_34 = arith.constant 0 : index
      %c0_35 = arith.constant 0 : index
      %30 = vector.load %arg5[%c1_33, %c0_34, %c0_35] : memref<2x128x128xbf16, #tpu.memory_space<vmem>>, vector<1x128x128xbf16>
      %31 = vector.shape_cast %30 : vector<1x128x128xbf16> to vector<128x128xbf16>
      %cst_36 = arith.constant dense<0.000000e+00> : vector<8x128xf32>
      %32 = tpu.matmul %29, %31, %cst_36 {dimension_numbers = #tpu.dot_dimension_numbers<[1], [0], [0], [1], [0, 0, 1, 1], [], []>} : vector<8x128xbf16>, vector<128x128xbf16>, vector<8x128xf32> -> vector<8x128xf32>
      %33 = arith.truncf %32 : vector<8x128xf32> to vector<8x128xbf16>
      %c1_37 = arith.constant 1 : index
      %c0_38 = arith.constant 0 : index
      %c0_39 = arith.constant 0 : index
      %34 = vector.load %arg8[%c1_37, %c0_38, %c0_39] : memref<2x8x128xbf16, #tpu.memory_space<vmem>>, vector<1x8x128xbf16>
      %35 = vector.shape_cast %34 : vector<1x8x128xbf16> to vector<8x128xbf16>
      %36 = vector.shape_cast %33 : vector<8x128xbf16> to vector<1x8x128xbf16>
      tpu.vector_store %arg8[%c1_37, %c0_38, %c0_39], %36 {strides = array<i32>} : memref<2x8x128xbf16, #tpu.memory_space<vmem>>, vector<1x8x128xbf16>,
    } else {
    }
    %c0 = arith.constant 0 : index
    %c0_1 = arith.constant 0 : index
    %c0_2 = arith.constant 0 : index
    %3 = vector.load %arg8[%c0, %c0_1, %c0_2] : memref<2x8x128xbf16, #tpu.memory_space<vmem>>, vector<1x8x128xbf16>
    %4 = vector.shape_cast %3 : vector<1x8x128xbf16> to vector<8x128xbf16>
    %c0_3 = arith.constant 0 : index
    %c0_4 = arith.constant 0 : index
    %c0_5 = arith.constant 0 : index
    %5 = vector.load %arg6[%c0_3, %c0_4, %c0_5] : memref<1x128x8xbf16, #tpu.memory_space<vmem>>, vector<1x128x8xbf16>
    %6 = vector.shape_cast %5 : vector<1x128x8xbf16> to vector<128x8xbf16>
    %cst = arith.constant dense<0.000000e+00> : vector<8x8xf32>
    %7 = tpu.matmul %4, %6, %cst {dimension_numbers = #tpu.dot_dimension_numbers<[1], [0], [0], [1], [0, 0, 1, 1], [], []>} : vector<8x128xbf16>, vector<128x8xbf16>, vector<8x8xf32> -> vector<8x8xf32>
    %c0_6 = arith.constant 0 : index
    %c0_7 = arith.constant 0 : index
    %c0_8 = arith.constant 0 : index
    %c0_9 = arith.constant 0 : index
    %8 = vector.load %arg7[%c0_6, %c0_7, %c0_8, %c0_9] : memref<1x2x8x8xf32, #tpu.memory_space<vmem>>, vector<1x1x8x8xf32>
    %9 = vector.shape_cast %8 : vector<1x1x8x8xf32> to vector<8x8xf32>
    %10 = vector.shape_cast %7 : vector<8x8xf32> to vector<1x1x8x8xf32>
    tpu.vector_store %arg7[%c0_6, %c0_7, %c0_8, %c0_9], %10 {strides = array<i32>} : memref<1x2x8x8xf32, #tpu.memory_space<vmem>>, vector<1x1x8x8xf32>,
    %c1 = arith.constant 1 : index
    %c0_10 = arith.constant 0 : index
    %c0_11 = arith.constant 0 : index
    %11 = vector.load %arg8[%c1, %c0_10, %c0_11] : memref<2x8x128xbf16, #tpu.memory_space<vmem>>, vector<1x8x128xbf16>
    %12 = vector.shape_cast %11 : vector<1x8x128xbf16> to vector<8x128xbf16>
    %c0_12 = arith.constant 0 : index
    %c0_13 = arith.constant 0 : index
    %c0_14 = arith.constant 0 : index
    %13 = vector.load %arg6[%c0_12, %c0_13, %c0_14] : memref<1x128x8xbf16, #tpu.memory_space<vmem>>, vector<1x128x8xbf16>
    %14 = vector.shape_cast %13 : vector<1x128x8xbf16> to vector<128x8xbf16>
    %cst_15 = arith.constant dense<0.000000e+00> : vector<8x8xf32>
    %15 = tpu.matmul %12, %14, %cst_15 {dimension_numbers = #tpu.dot_dimension_numbers<[1], [0], [0], [1], [0, 0, 1, 1], [], []>} : vector<8x128xbf16>, vector<128x8xbf16>, vector<8x8xf32> -> vector<8x8xf32>
    %c0_16 = arith.constant 0 : index
    %c1_17 = arith.constant 1 : index
    %c0_18 = arith.constant 0 : index
    %c0_19 = arith.constant 0 : index
    %16 = vector.load %arg7[%c0_16, %c1_17, %c0_18, %c0_19] : memref<1x2x8x8xf32, #tpu.memory_space<vmem>>, vector<1x1x8x8xf32>
    %17 = vector.shape_cast %16 : vector<1x1x8x8xf32> to vector<8x8xf32>
    %18 = vector.shape_cast %15 : vector<8x8xf32> to vector<1x1x8x8xf32>
    tpu.vector_store %arg7[%c0_16, %c1_17, %c0_18, %c0_19], %18 {strides = array<i32>} : memref<1x2x8x8xf32, #tpu.memory_space<vmem>>, vector<1x1x8x8xf32>,
    return
  }
  func.func @transform_0(%arg0: i32, %arg1: i32, %arg2: i32, %arg3: i32) -> (i32, i32, i32) {
    %c0_i32 = arith.constant 0 : i32
    %c0_i32_0 = arith.constant 0 : i32
    return %arg0, %arg2, %c0_i32 : i32, i32, i32
  }
  func.func @transform_1(%arg0: i32, %arg1: i32, %arg2: i32, %arg3: i32) -> (i32, i32, i32) {
    %c0_i32 = arith.constant 0 : i32
    %c0_i32_0 = arith.constant 0 : i32
    %c0_i32_1 = arith.constant 0 : i32
    return %arg1, %c0_i32, %c0_i32_0 : i32, i32, i32
  }
  func.func @transform_2(%arg0: i32, %arg1: i32, %arg2: i32, %arg3: i32) -> (i32, i32, i32) {
    %c0_i32 = arith.constant 0 : i32
    %c0_i32_0 = arith.constant 0 : i32
    return %arg0, %c0_i32, %arg3 : i32, i32, i32
  }
  func.func @transform_3(%arg0: i32, %arg1: i32, %arg2: i32, %arg3: i32) -> (i32, i32, i32, i32) {
    %c0_i32 = arith.constant 0 : i32
    return %arg0, %arg1, %arg2, %arg3 : i32, i32, i32, i32
  }
}

</mosaic_0001>

<llo_original>
// kernel: tpu_custom_call.1
$region0: #{tpu_custom_call.1}
  #allocation0 [shape = 'u32[]', space=smem, size = 0x4, offset = 0x4, fixed_abs, tag = 'smem constant byte address 0x4 - core index']
  #allocation1 [shape = 'u32[144,128]{1,0:T(1,128)}', space=vmem, size = 0x12000, scoped, tag = 'internal scratch']
  #allocation2 [shape = 'bf16[2,8,128]{2,1,0:T(8,128)(2,1)}', space=vmem, size = 0x1000, scoped, tag = 'scratch operand']
  %s0 = inlined_call_operand.vmem [shape: bf16[2,8,128], index: 0, kind: input, shape index: {}]
  %s1 = inlined_call_operand.vmem [shape: bf16[2,128,128], index: 1, kind: input, shape index: {}]
  %s2 = inlined_call_operand.vmem [shape: bf16[2,128,8], index: 2, kind: input, shape index: {}]
  %s3 = inlined_call_operand.hbm [shape: f32[2,2,8,8], index: 3, kind: output, shape index: {}]
  %s4 = sld [smem:[#allocation0]]
  $region49: #{tpu_custom_call.1} parent=0
    _
  %s6 = ssub.s32 1, %s4
  %s7 = scalar_select 0, %s6, %s4
  $region1: #{tpu_custom_call.1} parent=0
    #allocation3 [shape = 'u8[16384]{0}', space=vmem, size = 0x4000, scoped, tag = 'output window, operand 0']
    #allocation4 [shape = 's32[2]{0}', space=sflag, size = 0x8, scoped, tag = 'scoped memory for tpu_custom_call.1']
    %8 = vsyncpa [#allocation4], 0
    %s9 = scalar_lea.sflag [#allocation4], 1
    %10 = vsyncpa %s9, 0
    loop: start=0, step=1, limit=4
    $region2: #{tpu_custom_call.1} parent=1 // loop_pre_header
      _
    $region3: #{tpu_custom_call.1} parent=1 // loop_header
      %s12 = sphi 0, %s16
      %p13 = scmp.ge.s32.totalorder %s12, 4
      %s19 = sphi 0, %s45
      %s20 = sphi 0, %s41
      %s21 = sphi 0, %s37
      %s22 = sphi 0, %s33
      %s23 = sphi 0, %s19
      %s24 = sphi 0, %s20
      %s25 = sphi 0, %s21
      %s26 = sphi 0, %s22
      %s27 = sphi 0, %s23
      %s28 = sphi 0, %s24
      %s29 = sphi 0, %s25
      %s30 = sphi 0, %s26
      %s50 = sphi 0, %s52
      %s53 = sphi 0, %s50
      %s54 = sphi 0, %s53
      %s70 = sphi 0, %s54
      %s76 = sphi 0, %s78
      %s79 = sphi 0, %s76
      %s80 = sphi 0, %s79
      %s96 = sphi 0, %s80
      %s104 = sphi 0, %s106
      %s107 = sphi 0, %s104
      %s108 = sphi 0, %s107
      %s124 = sphi 0, %s108
      %s136 = sphi 0, %s138
      %s139 = sphi 0, %s136
      %s140 = sphi 0, %s139
      %s156 = sphi 0, %s140
    $region4: #{tpu_custom_call.1} parent=1 // loop_header_branch
      %15 = sbr.rel (%p13) target = $region8
    $region5: #{tpu_custom_call.1} parent=1 // loop_body
      %s17 = ssub.s32 %s12, 1
      %s18 = ssub.s32 %s12, 2
      %s31 = sadd.s32 1, %s22
      %p32 = scmp.ge.s32.totalorder %s31, 1
      %s33 = scalar_select %p32, 0, %s31
      %s34 = sadd.s32 1, %s21
      %s35 = scalar_select %p32, %s34, %s21
      %p36 = scmp.ge.s32.totalorder %s35, 1
      %s37 = scalar_select %p36, 0, %s35
      %s38 = sadd.s32 1, %s20
      %s39 = scalar_select %p36, %s38, %s20
      %p40 = scmp.ge.s32.totalorder %s39, 1
      %s41 = scalar_select %p40, 0, %s39
      %s42 = sadd.s32 1, %s19
      %s43 = scalar_select %p40, %s42, %s19
      %p44 = scmp.ge.s32.totalorder %s43, 2
      %s45 = scalar_select %p44, 0, %s43
      %s46 = ssub.s32 %s19, %s45
      %s47 = ssub.s32 %s21, %s37
      %s48 = sor.u32 %s46, %s47
      %p49 = scmp.eq.s32.totalorder %s48, 0
      %s51 = sadd.s32 %s50, 1
      %s52 = scalar_select %p49, %s50, %s51
      %p55 = pneg %p49
      %p56 = scmp.eq.s32.totalorder %s12, 1
      %p57 = por %p55, %p56
      %p58 = scmp.ne.s32.totalorder %s50, %s53
      %p59 = scmp.eq.s32.totalorder %s12, 0
      %p60 = por %p58, %p59
      %p61 = scmp.ne.s32.totalorder %s50, %s53
      %p62 = scmp.eq.s32.totalorder %s17, 1
      %p63 = por %p61, %p62
      %p64 = scmp.ne.s32.totalorder %s53, %s54
      %p65 = scmp.eq.s32.totalorder %s17, 0
      %p66 = por %p64, %p65
      %p67 = scmp.ne.s32.totalorder %s53, %s54
      %p68 = scmp.eq.s32.totalorder %s18, 1
      %p69 = por %p67, %p68
      %p71 = scmp.ne.s32.totalorder %s54, %s70
      %p72 = scmp.eq.s32.totalorder %s18, 0
      %p73 = por %p71, %p72
      %s74 = ssub.s32 %s20, %s41
      %p75 = scmp.eq.s32.totalorder %s74, 0
      %s77 = sadd.s32 %s76, 1
      %s78 = scalar_select %p75, %s76, %s77
      %p81 = pneg %p75
      %p82 = scmp.eq.s32.totalorder %s12, 1
      %p83 = por %p81, %p82
      %p84 = scmp.ne.s32.totalorder %s76, %s79
      %p85 = scmp.eq.s32.totalorder %s12, 0
      %p86 = por %p84, %p85
      %p87 = scmp.ne.s32.totalorder %s76, %s79
      %p88 = scmp.eq.s32.totalorder %s17, 1
      %p89 = por %p87, %p88
      %p90 = scmp.ne.s32.totalorder %s79, %s80
      %p91 = scmp.eq.s32.totalorder %s17, 0
      %p92 = por %p90, %p91
      %p93 = scmp.ne.s32.totalorder %s79, %s80
      %p94 = scmp.eq.s32.totalorder %s18, 1
      %p95 = por %p93, %p94
      %p97 = scmp.ne.s32.totalorder %s80, %s96
      %p98 = scmp.eq.s32.totalorder %s18, 0
      %p99 = por %p97, %p98
      %s100 = ssub.s32 %s19, %s45
      %s101 = ssub.s32 %s22, %s33
      %s102 = sor.u32 %s100, %s101
      %p103 = scmp.eq.s32.totalorder %s102, 0
      %s105 = sadd.s32 %s104, 1
      %s106 = scalar_select %p103, %s104, %s105
      %p109 = pneg %p103
      %p110 = scmp.eq.s32.totalorder %s12, 1
      %p111 = por %p109, %p110
      %p112 = scmp.ne.s32.totalorder %s104, %s107
      %p113 = scmp.eq.s32.totalorder %s12, 0
      %p114 = por %p112, %p113
      %p115 = scmp.ne.s32.totalorder %s104, %s107
      %p116 = scmp.eq.s32.totalorder %s17, 1
      %p117 = por %p115, %p116
      %p118 = scmp.ne.s32.totalorder %s107, %s108
      %p119 = scmp.eq.s32.totalorder %s17, 0
      %p120 = por %p118, %p119
      %p121 = scmp.ne.s32.totalorder %s107, %s108
      %p122 = scmp.eq.s32.totalorder %s18, 1
      %p123 = por %p121, %p122
      %p125 = scmp.ne.s32.totalorder %s108, %s124
      %p126 = scmp.eq.s32.totalorder %s18, 0
      %p127 = por %p125, %p126
      %s128 = ssub.s32 %s19, %s45
      %s129 = ssub.s32 %s20, %s41
      %s130 = sor.u32 %s128, %s129
      %s131 = ssub.s32 %s21, %s37
      %s132 = sor.u32 %s130, %s131
      %s133 = ssub.s32 %s22, %s33
      %s134 = sor.u32 %s132, %s133
      %p135 = scmp.eq.s32.totalorder %s134, 0
      %s137 = sadd.s32 %s136, 1
      %s138 = scalar_select %p135, %s136, %s137
      %p141 = pneg %p135
      %p142 = scmp.eq.s32.totalorder %s12, 1
      %p143 = por %p141, %p142
      %p144 = scmp.ne.s32.totalorder %s136, %s139
      %p145 = scmp.eq.s32.totalorder %s12, 0
      %p146 = por %p144, %p145
      %p147 = scmp.ne.s32.totalorder %s136, %s139
      %p148 = scmp.eq.s32.totalorder %s17, 1
      %p149 = por %p147, %p148
      %p150 = scmp.ne.s32.totalorder %s139, %s140
      %p151 = scmp.eq.s32.totalorder %s17, 0
      %p152 = por %p150, %p151
      %p153 = scmp.ne.s32.totalorder %s139, %s140
      %p154 = scmp.eq.s32.totalorder %s18, 1
      %p155 = por %p153, %p154
      %p157 = scmp.ne.s32.totalorder %s140, %s156
      %p158 = scmp.eq.s32.totalorder %s18, 0
      %p159 = por %p157, %p158
      %p160 = scmp.le.s32.totalorder 1, %s12
      %p161 = scmp.lt.s32.totalorder %s12, 3
      %p162 = pnand %p160, %p161
      %p163 = pneg %p162
      // Predicated region
      $region9: #{tpu_custom_call.1} parent=5 // pred_check
        _
      $region10: #{tpu_custom_call.1} parent=5 // pred_check_branch
        %165 = sbr.rel (%p162) target = $region12
      $region11: #{tpu_custom_call.1} parent=5 // pred_region
        %s166 = ssub.s32 %s12, 1
        // Predicated region
        $region13: #{tpu_custom_call.1} parent=11 // pred_check
          %p167 = pneg %p92
        $region14: #{tpu_custom_call.1} parent=11 // pred_check_branch
          %169 = sbr.rel (%p167) target = $region16
        $region15: #{tpu_custom_call.1} parent=11 // pred_region
          %s170 = smul.u32 2, %s24
          %p171 = scmp.lt.s32.totalorder %s170, 1
          %s172 = scalar_select %p171, %s170, 1
          %s173 = smul.addr %s172, 16
          %s174 = smul.addr %s173, 4
          %s175 = scalar_lea.vmem %s1, %s174
          %s176 = smul.u32 2, %s24
        $region16: #{tpu_custom_call.1} parent=11 // pred_fallthru
          _
      $region12: #{tpu_custom_call.1} parent=5 // pred_fallthru
        _
      %p177 = scmp.lt.s32.totalorder %s12, 2
      // Predicated region
      $region17: #{tpu_custom_call.1} parent=5 // pred_check
        %p178 = pneg %p177
      $region18: #{tpu_custom_call.1} parent=5 // pred_check_branch
        %180 = sbr.rel (%p178) target = $region20
      $region19: #{tpu_custom_call.1} parent=5 // pred_region
        // Predicated region
        $region21: #{tpu_custom_call.1} parent=19 // pred_check
          %p181 = pneg %p60
        $region22: #{tpu_custom_call.1} parent=19 // pred_check_branch
          %183 = sbr.rel (%p181) target = $region24
        $region23: #{tpu_custom_call.1} parent=19 // pred_region
          %p184 = scmp.lt.s32.totalorder %s19, 1
          %s185 = scalar_select %p184, %s19, 1
          %p186 = scmp.lt.s32.totalorder %s21, 0
          %s187 = scalar_select %p186, %s21, 0
          %s188 = sadd.s32 %s187, %s185
          %s189 = smul.addr %s188, 4
          %s190 = scalar_lea.vmem %s0, %s189
        $region24: #{tpu_custom_call.1} parent=19 // pred_fallthru
          _
        // Predicated region
        $region25: #{tpu_custom_call.1} parent=19 // pred_check
          %p191 = pneg %p114
        $region26: #{tpu_custom_call.1} parent=19 // pred_check_branch
          %193 = sbr.rel (%p191) target = $region28
        $region27: #{tpu_custom_call.1} parent=19 // pred_region
          %p194 = scmp.lt.s32.totalorder %s19, 1
          %s195 = scalar_select %p194, %s19, 1
          %p196 = scmp.lt.s32.totalorder %s22, 0
          %s197 = scalar_select %p196, %s22, 0
          %s198 = smul.addr %s195, 16
          %s199 = sadd.s32 %s197, %s198
          %s200 = smul.addr %s199, 4
          %s201 = scalar_lea.vmem %s2, %s200
        $region28: #{tpu_custom_call.1} parent=19 // pred_fallthru
          _
      $region20: #{tpu_custom_call.1} parent=5 // pred_fallthru
        _
      %p202 = scmp.le.s32.totalorder 1, %s12
      %p203 = scmp.lt.s32.totalorder %s12, 3
      %p204 = pnand %p202, %p203
      %p205 = pneg %p204
      // Predicated region
      $region29: #{tpu_custom_call.1} parent=5 // pred_check
        _
      $region30: #{tpu_custom_call.1} parent=5 // pred_check_branch
        %207 = sbr.rel (%p204) target = $region32
      $region31: #{tpu_custom_call.1} parent=5 // pred_region
        %s208 = ssub.s32 %s12, 1
        %p209 = scmp.lt.s32.totalorder %s23, 1
        %s210 = scalar_select %p209, %s23, 1
        %p211 = scmp.lt.s32.totalorder %s25, 0
        %s212 = scalar_select %p211, %s25, 0
        %s213 = sadd.s32 %s212, %s210
        %s214 = smul.addr %s213, 4
        %s215 = scalar_lea.vmem %s0, %s214
        %p216 = pneg %p66
        %p217 = pneg %p63
        %s218 = smul.u32 2, %s24
        %p219 = scmp.lt.s32.totalorder %s218, 1
        %s220 = scalar_select %p219, %s218, 1
        %s221 = smul.addr %s220, 16
        %s222 = smul.addr %s221, 4
        %s223 = scalar_lea.vmem %s1, %s222
        %p224 = pneg %p92
        %p225 = pneg %p89
        %p226 = scmp.lt.s32.totalorder %s23, 1
        %s227 = scalar_select %p226, %s23, 1
        %p228 = scmp.lt.s32.totalorder %s26, 0
        %s229 = scalar_select %p228, %s26, 0
        %s230 = smul.addr %s227, 16
        %s231 = sadd.s32 %s229, %s230
        %s232 = smul.addr %s231, 4
        %s233 = scalar_lea.vmem %s2, %s232
        %p234 = pneg %p120
        %p235 = pneg %p117
        %p236 = pneg %p152
        %p237 = pneg %p149
        %s238 = sand.u32 %s139, 1
        %s239 = scalar_lea.sflag [#allocation4], %s238
        %s240 = sand.u32 %s139, 1
        %s241 = smul.addr %s240, 16
        %s242 = scalar_lea.vmem [#allocation3], %s241
        %p243 = scmp.lt.s32.totalorder %s23, 1
        %s244 = scalar_select %p243, %s23, 1
        %p245 = scmp.lt.s32.totalorder %s25, 0
        %s246 = scalar_select %p245, %s25, 0
        %s247 = sadd.s32 %s246, %s244
        %s248 = smul.addr %s247, 4
        %s249 = scalar_lea.vmem %s0, %s248
        %s250 = smul.u32 2, %s24
        %p251 = scmp.lt.s32.totalorder %s250, 1
        %s252 = scalar_select %p251, %s250, 1
        %s253 = smul.addr %s252, 16
        %s254 = smul.addr %s253, 4
        %s255 = scalar_lea.vmem %s1, %s254
        %s256 = smul.u32 2, %s24
        %p257 = scmp.lt.s32.totalorder %s23, 1
        %s258 = scalar_select %p257, %s23, 1
        %p259 = scmp.lt.s32.totalorder %s26, 0
        %s260 = scalar_select %p259, %s26, 0
        %s261 = smul.addr %s258, 16
        %s262 = sadd.s32 %s260, %s261
        %s263 = smul.addr %s262, 4
        %s264 = scalar_lea.vmem %s2, %s263
        %s265 = smul.u32 2, %s24
        %p267 = scmp.eq.s32.totalorder %s26, 0
        // Predicated region
        $region33: #{tpu_custom_call.1} parent=31 // pred_check
          %p268 = pneg %p267
        $region34: #{tpu_custom_call.1} parent=31 // pred_check_branch
          %270 = sbr.rel (%p268) target = $region36
        $region35: #{tpu_custom_call.1} parent=31 // pred_region
          %v271 = vld [vmem:[%s249] sm:$0xf]
          %v272 = vld [vmem:[%s255] sm:$0xf]
          %v273 = vld [vmem:[%s255 + $0x4] sm:$0xf]
          %v274 = vld [vmem:[%s255 + $0x8] sm:$0xf]
          %v275 = vld [vmem:[%s255 + $0xc] sm:$0xf]
          %v276 = vld [vmem:[%s255 + $0x10] sm:$0xf]
          %v277 = vld [vmem:[%s255 + $0x14] sm:$0xf]
          %v278 = vld [vmem:[%s255 + $0x18] sm:$0xf]
          %v279 = vld [vmem:[%s255 + $0x1c] sm:$0xf]
          %v280 = vld [vmem:[%s255 + $0x20] sm:$0xf]
          %v281 = vld [vmem:[%s255 + $0x24] sm:$0xf]
          %v282 = vld [vmem:[%s255 + $0x28] sm:$0xf]
          %v283 = vld [vmem:[%s255 + $0x2c] sm:$0xf]
          %v284 = vld [vmem:[%s255 + $0x30] sm:$0xf]
          %v285 = vld [vmem:[%s255 + $0x34] sm:$0xf]
          %v286 = vld [vmem:[%s255 + $0x38] sm:$0xf]
          %v287 = vld [vmem:[%s255 + $0x3c] sm:$0xf]
          %v304 = vunpack.c.l.b16 %v272
          %v305 = vunpack.c.l.b16 %v273
          %v306 = vunpack.c.l.b16 %v274
          %v307 = vunpack.c.l.b16 %v275
          %v308 = vunpack.c.l.b16 %v276
          %v309 = vunpack.c.l.b16 %v277
          %v310 = vunpack.c.l.b16 %v278
          %v311 = vunpack.c.l.b16 %v279
          %v312 = vunpack.c.l.b16 %v280
          %v313 = vunpack.c.l.b16 %v281
          %v314 = vunpack.c.l.b16 %v282
          %v315 = vunpack.c.l.b16 %v283
          %v316 = vunpack.c.l.b16 %v284
          %v317 = vunpack.c.l.b16 %v285
          %v318 = vunpack.c.l.b16 %v286
          %v319 = vunpack.c.l.b16 %v287
          %v320 = vpack.c.b16 %v305, %v304
          %v321 = vpack.c.b16 %v307, %v306
          %v322 = vpack.c.b16 %v309, %v308
          %v323 = vpack.c.b16 %v311, %v310
          %v324 = vpack.c.b16 %v313, %v312
          %v325 = vpack.c.b16 %v315, %v314
          %v326 = vpack.c.b16 %v317, %v316
          %v327 = vpack.c.b16 %v319, %v318
          %336 = vmatprep.subr.bf16.mxu0 0
          %337 = vmatpush1.bf16.msra.mxu0 %v320
          %338 = vmatprep.subr.bf16.mxu0 0
          %339 = vmatpush1.bf16.msra.mxu0 %v321
          %340 = vmatprep.subr.bf16.mxu0 0
          %341 = vmatpush1.bf16.msra.mxu0 %v322
          %342 = vmatprep.subr.bf16.mxu0 0
          %343 = vmatpush1.bf16.msra.mxu0 %v323
          %344 = vmatprep.subr.bf16.mxu0 0
          %345 = vmatpush1.bf16.msra.mxu0 %v324
          %346 = vmatprep.subr.bf16.mxu0 0
          %347 = vmatpush1.bf16.msra.mxu0 %v325
          %348 = vmatprep.subr.bf16.mxu0 0
          %349 = vmatpush1.bf16.msra.mxu0 %v326
          %350 = vmatprep.subr.bf16.mxu0 0
          %351 = vmatpush1.bf16.msra.mxu0 %v327
          %352 = vmatprep.subr.bf16.mxu0 0
          %353 = vmatpush1.bf16.msra.mxu0 0
          %354 = vmatprep.subr.bf16.mxu0 0
          %355 = vmatpush1.bf16.msra.mxu0 0
          %356 = vmatprep.subr.bf16.mxu0 0
          %357 = vmatpush1.bf16.msra.mxu0 0
          %358 = vmatprep.subr.bf16.mxu0 0
          %359 = vmatpush1.bf16.msra.mxu0 0
          %360 = vmatprep.subr.bf16.mxu0 0
          %361 = vmatpush1.bf16.msra.mxu0 0
          %362 = vmatprep.subr.bf16.mxu0 0
          %363 = vmatpush1.bf16.msra.mxu0 0
          %364 = vmatprep.subr.bf16.mxu0 0
          %365 = vmatpush1.bf16.msra.mxu0 0
          %366 = vmatprep.subr.bf16.mxu0 0
          %367 = vmatpush1.bf16.msra.mxu0 0
          %368 = vmatprep.mubr.bf16.mxu0 0
          %369 = vmatmul.mubr.bf16.gmra.mrb[0].mxu0 %v271
          %v370 = vpop.f32.mrb[0].mxu0
          %v371 = vadd.f32 0.0, %v370
          %v372 = vpop.f32.mrb[0].mxu0
          %v373 = vpop.f32.mrb[0].mxu0
          %v374 = vpop.f32.mrb[0].mxu0
          %375 = vdwg.mxu0
          %v376 = vpack.c.bf16 %v371, %v371
          %377 = vst [vmem:[#allocation2] sm:$0xf] %v376
          %v378 = vld [vmem:[%s249] sm:$0xf]
          %s379 = scalar_lea.vmem %s255, 64
          %v380 = vld [vmem:[%s379] sm:$0xf]
          %v381 = vld [vmem:[%s379 + $0x4] sm:$0xf]
          %v382 = vld [vmem:[%s379 + $0x8] sm:$0xf]
          %v383 = vld [vmem:[%s379 + $0xc] sm:$0xf]
          %v384 = vld [vmem:[%s379 + $0x10] sm:$0xf]
          %v385 = vld [vmem:[%s379 + $0x14] sm:$0xf]
          %v386 = vld [vmem:[%s379 + $0x18] sm:$0xf]
          %v387 = vld [vmem:[%s379 + $0x1c] sm:$0xf]
          %v388 = vld [vmem:[%s379 + $0x20] sm:$0xf]
          %v389 = vld [vmem:[%s379 + $0x24] sm:$0xf]
          %v390 = vld [vmem:[%s379 + $0x28] sm:$0xf]
          %v391 = vld [vmem:[%s379 + $0x2c] sm:$0xf]
          %v392 = vld [vmem:[%s379 + $0x30] sm:$0xf]
          %v393 = vld [vmem:[%s379 + $0x34] sm:$0xf]
          %v394 = vld [vmem:[%s379 + $0x38] sm:$0xf]
          %v395 = vld [vmem:[%s379 + $0x3c] sm:$0xf]
          %v412 = vunpack.c.l.b16 %v380
          %v413 = vunpack.c.l.b16 %v381
          %v414 = vunpack.c.l.b16 %v382
          %v415 = vunpack.c.l.b16 %v383
          %v416 = vunpack.c.l.b16 %v384
          %v417 = vunpack.c.l.b16 %v385
          %v418 = vunpack.c.l.b16 %v386
          %v419 = vunpack.c.l.b16 %v387
          %v420 = vunpack.c.l.b16 %v388
          %v421 = vunpack.c.l.b16 %v389
          %v422 = vunpack.c.l.b16 %v390
          %v423 = vunpack.c.l.b16 %v391
          %v424 = vunpack.c.l.b16 %v392
          %v425 = vunpack.c.l.b16 %v393
          %v426 = vunpack.c.l.b16 %v394
          %v427 = vunpack.c.l.b16 %v395
          %v428 = vpack.c.b16 %v413, %v412
          %v429 = vpack.c.b16 %v415, %v414
          %v430 = vpack.c.b16 %v417, %v416
          %v431 = vpack.c.b16 %v419, %v418
          %v432 = vpack.c.b16 %v421, %v420
          %v433 = vpack.c.b16 %v423, %v422
          %v434 = vpack.c.b16 %v425, %v424
          %v435 = vpack.c.b16 %v427, %v426
          %444 = vmatprep.subr.bf16.mxu0 0
          %445 = vmatpush1.bf16.msra.mxu0 %v428
          %446 = vmatprep.subr.bf16.mxu0 0
          %447 = vmatpush1.bf16.msra.mxu0 %v429
          %448 = vmatprep.subr.bf16.mxu0 0
          %449 = vmatpush1.bf16.msra.mxu0 %v430
          %450 = vmatprep.subr.bf16.mxu0 0
          %451 = vmatpush1.bf16.msra.mxu0 %v431
          %452 = vmatprep.subr.bf16.mxu0 0
          %453 = vmatpush1.bf16.msra.mxu0 %v432
          %454 = vmatprep.subr.bf16.mxu0 0
          %455 = vmatpush1.bf16.msra.mxu0 %v433
          %456 = vmatprep.subr.bf16.mxu0 0
          %457 = vmatpush1.bf16.msra.mxu0 %v434
          %458 = vmatprep.subr.bf16.mxu0 0
          %459 = vmatpush1.bf16.msra.mxu0 %v435
          %460 = vmatprep.subr.bf16.mxu0 0
          %461 = vmatpush1.bf16.msra.mxu0 0
          %462 = vmatprep.subr.bf16.mxu0 0
          %463 = vmatpush1.bf16.msra.mxu0 0
          %464 = vmatprep.subr.bf16.mxu0 0
          %465 = vmatpush1.bf16.msra.mxu0 0
          %466 = vmatprep.subr.bf16.mxu0 0
          %467 = vmatpush1.bf16.msra.mxu0 0
          %468 = vmatprep.subr.bf16.mxu0 0
          %469 = vmatpush1.bf16.msra.mxu0 0
          %470 = vmatprep.subr.bf16.mxu0 0
          %471 = vmatpush1.bf16.msra.mxu0 0
          %472 = vmatprep.subr.bf16.mxu0 0
          %473 = vmatpush1.bf16.msra.mxu0 0
          %474 = vmatprep.subr.bf16.mxu0 0
          %475 = vmatpush1.bf16.msra.mxu0 0
          %476 = vmatprep.mubr.bf16.mxu0 0
          %477 = vmatmul.mubr.bf16.gmra.mrb[0].mxu0 %v378
          %v478 = vpop.f32.mrb[0].mxu0
          %v479 = vadd.f32 0.0, %v478
          %v480 = vpop.f32.mrb[0].mxu0
          %v481 = vpop.f32.mrb[0].mxu0
          %v482 = vpop.f32.mrb[0].mxu0
          %483 = vdwg.mxu0
          %v484 = vpack.c.bf16 %v479, %v479
          %s485 = scalar_lea.vmem [#allocation2], 4
          %486 = vst [vmem:[%s485] sm:$0xf] %v484
        $region36: #{tpu_custom_call.1} parent=31 // pred_fallthru
          _
        %v487 = vld [vmem:[#allocation2] sm:$0xf]
        %v488 = vld [vmem:[%s264] sm:$0xf]
        %v489 = vld [vmem:[%s264 + $0x4] sm:$0xf]
        %v490 = vld [vmem:[%s264 + $0x8] sm:$0xf]
        %v491 = vld [vmem:[%s264 + $0xc] sm:$0xf]
        %v492 = vld [vmem:[%s264 + $0x10] sm:$0xf]
        %v493 = vld [vmem:[%s264 + $0x14] sm:$0xf]
        %v494 = vld [vmem:[%s264 + $0x18] sm:$0xf]
        %v495 = vld [vmem:[%s264 + $0x1c] sm:$0xf]
        %v496 = vld [vmem:[%s264 + $0x20] sm:$0xf]
        %v497 = vld [vmem:[%s264 + $0x24] sm:$0xf]
        %v498 = vld [vmem:[%s264 + $0x28] sm:$0xf]
        %v499 = vld [vmem:[%s264 + $0x2c] sm:$0xf]
        %v500 = vld [vmem:[%s264 + $0x30] sm:$0xf]
        %v501 = vld [vmem:[%s264 + $0x34] sm:$0xf]
        %v502 = vld [vmem:[%s264 + $0x38] sm:$0xf]
        %v503 = vld [vmem:[%s264 + $0x3c] sm:$0xf]
        %v520 = vunpack.c.l.b16 %v488
        %v521 = vunpack.c.l.b16 %v489
        %v522 = vunpack.c.l.b16 %v490
        %v523 = vunpack.c.l.b16 %v491
        %v524 = vunpack.c.l.b16 %v492
        %v525 = vunpack.c.l.b16 %v493
        %v526 = vunpack.c.l.b16 %v494
        %v527 = vunpack.c.l.b16 %v495
        %v528 = vunpack.c.l.b16 %v496
        %v529 = vunpack.c.l.b16 %v497
        %v530 = vunpack.c.l.b16 %v498
        %v531 = vunpack.c.l.b16 %v499
        %v532 = vunpack.c.l.b16 %v500
        %v533 = vunpack.c.l.b16 %v501
        %v534 = vunpack.c.l.b16 %v502
        %v535 = vunpack.c.l.b16 %v503
        %v536 = vpack.c.b16 %v521, %v520
        %v537 = vpack.c.b16 %v523, %v522
        %v538 = vpack.c.b16 %v525, %v524
        %v539 = vpack.c.b16 %v527, %v526
        %v540 = vpack.c.b16 %v529, %v528
        %v541 = vpack.c.b16 %v531, %v530
        %v542 = vpack.c.b16 %v533, %v532
        %v543 = vpack.c.b16 %v535, %v534
        %552 = vmatprep.subr.bf16.mxu0 0
        %553 = vmatpush1.bf16.msra.mxu0 %v536
        %554 = vmatprep.subr.bf16.mxu0 0
        %555 = vmatpush1.bf16.msra.mxu0 %v537
        %556 = vmatprep.subr.bf16.mxu0 0
        %557 = vmatpush1.bf16.msra.mxu0 %v538
        %558 = vmatprep.subr.bf16.mxu0 0
        %559 = vmatpush1.bf16.msra.mxu0 %v539
        %560 = vmatprep.subr.bf16.mxu0 0
        %561 = vmatpush1.bf16.msra.mxu0 %v540
        %562 = vmatprep.subr.bf16.mxu0 0
        %563 = vmatpush1.bf16.msra.mxu0 %v541
        %564 = vmatprep.subr.bf16.mxu0 0
        %565 = vmatpush1.bf16.msra.mxu0 %v542
        %566 = vmatprep.subr.bf16.mxu0 0
        %567 = vmatpush1.bf16.msra.mxu0 %v543
        %568 = vmatprep.subr.bf16.mxu0 0
        %569 = vmatpush1.bf16.msra.mxu0 0
        %570 = vmatprep.subr.bf16.mxu0 0
        %571 = vmatpush1.bf16.msra.mxu0 0
        %572 = vmatprep.subr.bf16.mxu0 0
        %573 = vmatpush1.bf16.msra.mxu0 0
        %574 = vmatprep.subr.bf16.mxu0 0
        %575 = vmatpush1.bf16.msra.mxu0 0
        %576 = vmatprep.subr.bf16.mxu0 0
        %577 = vmatpush1.bf16.msra.mxu0 0
        %578 = vmatprep.subr.bf16.mxu0 0
        %579 = vmatpush1.bf16.msra.mxu0 0
        %580 = vmatprep.subr.bf16.mxu0 0
        %581 = vmatpush1.bf16.msra.mxu0 0
        %582 = vmatprep.subr.bf16.mxu0 0
        %583 = vmatpush1.bf16.msra.mxu0 0
        %584 = vmatprep.mubr.bf16.mxu0 0
        %585 = vmatmul.mubr.bf16.gmra.mrb[0].mxu0 %v487
        %v586 = vpop.f32.mrb[0].mxu0
        %v587 = vadd.f32 0.0, %v586
        %v588 = vpop.f32.mrb[0].mxu0
        %v589 = vpop.f32.mrb[0].mxu0
        %v590 = vpop.f32.mrb[0].mxu0
        %591 = vdwg.mxu0
        %vm592 = vcmask 64512
        %593 = vst.msk [vmem:[%s242] sm:$0xff] %vm592, %v587
        %s594 = scalar_lea.vmem [#allocation2], 4
        %v595 = vld [vmem:[%s594] sm:$0xf]
        %v596 = vld [vmem:[%s264] sm:$0xf]
        %v597 = vld [vmem:[%s264 + $0x4] sm:$0xf]
        %v598 = vld [vmem:[%s264 + $0x8] sm:$0xf]
        %v599 = vld [vmem:[%s264 + $0xc] sm:$0xf]
        %v600 = vld [vmem:[%s264 + $0x10] sm:$0xf]
        %v601 = vld [vmem:[%s264 + $0x14] sm:$0xf]
        %v602 = vld [vmem:[%s264 + $0x18] sm:$0xf]
        %v603 = vld [vmem:[%s264 + $0x1c] sm:$0xf]
        %v604 = vld [vmem:[%s264 + $0x20] sm:$0xf]
        %v605 = vld [vmem:[%s264 + $0x24] sm:$0xf]
        %v606 = vld [vmem:[%s264 + $0x28] sm:$0xf]
        %v607 = vld [vmem:[%s264 + $0x2c] sm:$0xf]
        %v608 = vld [vmem:[%s264 + $0x30] sm:$0xf]
        %v609 = vld [vmem:[%s264 + $0x34] sm:$0xf]
        %v610 = vld [vmem:[%s264 + $0x38] sm:$0xf]
        %v611 = vld [vmem:[%s264 + $0x3c] sm:$0xf]
        %v628 = vunpack.c.l.b16 %v596
        %v629 = vunpack.c.l.b16 %v597
        %v630 = vunpack.c.l.b16 %v598
        %v631 = vunpack.c.l.b16 %v599
        %v632 = vunpack.c.l.b16 %v600
        %v633 = vunpack.c.l.b16 %v601
        %v634 = vunpack.c.l.b16 %v602
        %v635 = vunpack.c.l.b16 %v603
        %v636 = vunpack.c.l.b16 %v604
        %v637 = vunpack.c.l.b16 %v605
        %v638 = vunpack.c.l.b16 %v606
        %v639 = vunpack.c.l.b16 %v607
        %v640 = vunpack.c.l.b16 %v608
        %v641 = vunpack.c.l.b16 %v609
        %v642 = vunpack.c.l.b16 %v610
        %v643 = vunpack.c.l.b16 %v611
        %v644 = vpack.c.b16 %v629, %v628
        %v645 = vpack.c.b16 %v631, %v630
        %v646 = vpack.c.b16 %v633, %v632
        %v647 = vpack.c.b16 %v635, %v634
        %v648 = vpack.c.b16 %v637, %v636
        %v649 = vpack.c.b16 %v639, %v638
        %v650 = vpack.c.b16 %v641, %v640
        %v651 = vpack.c.b16 %v643, %v642
        %660 = vmatprep.subr.bf16.mxu0 0
        %661 = vmatpush1.bf16.msra.mxu0 %v644
        %662 = vmatprep.subr.bf16.mxu0 0
        %663 = vmatpush1.bf16.msra.mxu0 %v645
        %664 = vmatprep.subr.bf16.mxu0 0
        %665 = vmatpush1.bf16.msra.mxu0 %v646
        %666 = vmatprep.subr.bf16.mxu0 0
        %667 = vmatpush1.bf16.msra.mxu0 %v647
        %668 = vmatprep.subr.bf16.mxu0 0
        %669 = vmatpush1.bf16.msra.mxu0 %v648
        %670 = vmatprep.subr.bf16.mxu0 0
        %671 = vmatpush1.bf16.msra.mxu0 %v649
        %672 = vmatprep.subr.bf16.mxu0 0
        %673 = vmatpush1.bf16.msra.mxu0 %v650
        %674 = vmatprep.subr.bf16.mxu0 0
        %675 = vmatpush1.bf16.msra.mxu0 %v651
        %676 = vmatprep.subr.bf16.mxu0 0
        %677 = vmatpush1.bf16.msra.mxu0 0
        %678 = vmatprep.subr.bf16.mxu0 0
        %679 = vmatpush1.bf16.msra.mxu0 0
        %680 = vmatprep.subr.bf16.mxu0 0
        %681 = vmatpush1.bf16.msra.mxu0 0
        %682 = vmatprep.subr.bf16.mxu0 0
        %683 = vmatpush1.bf16.msra.mxu0 0
        %684 = vmatprep.subr.bf16.mxu0 0
        %685 = vmatpush1.bf16.msra.mxu0 0
        %686 = vmatprep.subr.bf16.mxu0 0
        %687 = vmatpush1.bf16.msra.mxu0 0
        %688 = vmatprep.subr.bf16.mxu0 0
        %689 = vmatpush1.bf16.msra.mxu0 0
        %690 = vmatprep.subr.bf16.mxu0 0
        %691 = vmatpush1.bf16.msra.mxu0 0
        %692 = vmatprep.mubr.bf16.mxu0 0
        %693 = vmatmul.mubr.bf16.gmra.mrb[0].mxu0 %v595
        %v694 = vpop.f32.mrb[0].mxu0
        %v695 = vadd.f32 0.0, %v694
        %v696 = vpop.f32.mrb[0].mxu0
        %v697 = vpop.f32.mrb[0].mxu0
        %v698 = vpop.f32.mrb[0].mxu0
        %699 = vdwg.mxu0
        %s700 = scalar_lea.vmem %s242, 8 [#allocation3]
        %701 = vst.msk [vmem:[%s700] sm:$0xff] %vm592, %v695
        %s702 = sand.u32 %s139, 1
        %s703 = scalar_lea.sflag [#allocation4], %s702
        %s704 = sand.u32 %s139, 1
        %s705 = smul.addr %s704, 16
        %s706 = scalar_lea.vmem [#allocation3], %s705
        // Predicated region
        $region37: #{tpu_custom_call.1} parent=31 // pred_check
          %p707 = pneg %p149
        $region38: #{tpu_custom_call.1} parent=31 // pred_check_branch
          %709 = sbr.rel (%p707) target = $region40
        $region39: #{tpu_custom_call.1} parent=31 // pred_region
          %s710 = smul.u32 2, %s24
          %s712 = ssub.s32 256, 256
          %713 = vsyncadd %s703, %s712
          %s714 = sadd.s32 %s26, %s25
          %s715 = sadd.s32 %s714, %s710
          %s716 = smul.addr %s23, 2
          %s717 = sadd.s32 %s715, %s716
          %s718 = smul.addr %s717, 128
          %s719 = scalar_lea.hbm %s3, %s718
          %s720 = sshll.u32 %s706, 4
          %s721 = int_to_ptr.vmem [resolvable:$true] %s720
          %726 = dma.vmem_to_hbm [thread:$0]  %s721, 256, %s719, %s703, 128, 128, 8
        $region40: #{tpu_custom_call.1} parent=31 // pred_fallthru
          _
      $region32: #{tpu_custom_call.1} parent=5 // pred_fallthru
        _
      %p727 = scmp.le.s32.totalorder 2, %s12
      // Predicated region
      $region41: #{tpu_custom_call.1} parent=5 // pred_check
        %p728 = pneg %p727
      $region42: #{tpu_custom_call.1} parent=5 // pred_check_branch
        %730 = sbr.rel (%p728) target = $region44
      $region43: #{tpu_custom_call.1} parent=5 // pred_region
        %s731 = ssub.s32 %s12, 2
        // Predicated region
        $region45: #{tpu_custom_call.1} parent=43 // pred_check
          %p732 = pneg %p155
        $region46: #{tpu_custom_call.1} parent=43 // pred_check_branch
          %734 = sbr.rel (%p732) target = $region48
        $region47: #{tpu_custom_call.1} parent=43 // pred_region
          %s735 = sand.u32 %s140, 1
          %s736 = scalar_lea.sflag [#allocation4], %s735
          %s737 = sand.u32 %s140, 1
          %s738 = smul.addr %s737, 16
          %s739 = scalar_lea.vmem [#allocation3], %s738
          %740 = dma.done %s736, 256
        $region48: #{tpu_custom_call.1} parent=43 // pred_fallthru
          _
      $region44: #{tpu_custom_call.1} parent=5 // pred_fallthru
        _
    $region6: #{tpu_custom_call.1} parent=1 // loop_footer
      %s16 = sadd.s32 1, %s12
    $region7: #{tpu_custom_call.1} parent=1 // loop_footer_branch
      %11 = sbr.rel target = $region3
    $region8: #{tpu_custom_call.1} parent=1 // loop_exit
      _
    %741 = vsyncpa [#allocation4], 1
    %s742 = scalar_lea.sflag [#allocation4], 1
    %743 = vsyncpa %s742, 1

</llo_original>
